<compile_context>
chip_gen: v5e
topology: v5e:2x2
jax: 0.10.0
libtpu: 0.0.40
codegen_flags: <defaults>
</compile_context>

<pallas_src>
import jax
import jax.numpy as jnp
from jax.experimental import pallas as pl
from jax.experimental.pallas import tpu as pltpu


PAD = 128      # lane-dense feature width (all feature dims here are <= 128)
SUBLANE = 8    # f32 sublane tile


# ---------------------------------------------------------------------------
# Pallas kernel: full DiGCNIB forward (3 fused inception blocks), one grid step
# per independent node-feature batch.
# ---------------------------------------------------------------------------
def _digcnib_kernel(x_ref, a1_ref, a2_ref, w_ref, b_ref, o_ref):
    p = PAD
    a1 = a1_ref[...]                      # [Np, Np] bf16, VMEM-resident across grid
    a2 = a2_ref[...]                      # [Np, Np] bf16
    h = x_ref[0]                          # [Np, P] f32 (zero row/lane padded)

    # Static Python loop over the three inception blocks (fully unrolled).
    for blk in range(3):
        w = w_ref[blk]                    # [P, 3P] bf16: [W_ln | W1 | W2]
        # One wide MXU issue for the three linear maps:
        #   lanes [0:P)=x@W_ln, [P:2P)=x@W1, [2P:3P)=x@W2
        xw = jnp.dot(h.astype(jnp.bfloat16), w,
                     preferred_element_type=jnp.float32)          # [Np, 3P] f32
        x0 = xw[:, 0:p]
        # Propagation: A1@(xW1) + A2@(xW2) as two small dots (no concat/relayout).
        prop = jnp.dot(a1, xw[:, p:2 * p].astype(jnp.bfloat16),
                       preferred_element_type=jnp.float32)
        prop = prop + jnp.dot(a2, xw[:, 2 * p:3 * p].astype(jnp.bfloat16),
                              preferred_element_type=jnp.float32)
        # Folded bias (b_ln + b1 + b2); dropout is identity in eval mode.
        h = x0 + prop + b_ref[blk]

    o_ref[0] = h.astype(o_ref.dtype)


def digcnib_forward(x_b, a1, a2, w_all, b_all):
    """Run the 3-block DiGCNIB forward for a batch of node-feature matrices that
    share the graph and weights.

    x_b:   [B, N, d_in] f32
    a1,a2: [N, N] f32 dense adjacencies
    w_all: [3, PAD, 3*PAD] bf16 packed weights ([W_ln | W1 | W2] per block)
    b_all: [3, 1, PAD] f32 folded biases (b_ln + b1 + b2 per block)
    Returns the lane/row padded output [B, Np, PAD] f32 (consumer slices).
    """
    B, n, d_in = x_b.shape
    assert d_in <= PAD, d_in
    n_pad = ((n + SUBLANE - 1) // SUBLANE) * SUBLANE

    x_pad = jnp.pad(x_b, ((0, 0), (0, n_pad - n), (0, PAD - d_in)))
    a1p = jnp.pad(a1, ((0, n_pad - n), (0, n_pad - n))).astype(jnp.bfloat16)
    a2p = jnp.pad(a2, ((0, n_pad - n), (0, n_pad - n))).astype(jnp.bfloat16)

    operand_bytes = (x_pad.size * 4 + a1p.size * 2 + a2p.size * 2
                     + w_all.size * 2 + b_all.size * 4 + B * n_pad * PAD * 4)
    vmem_limit = int(min(100 << 20, max(32 << 20, 6 * operand_bytes)))

    flops = B * 3 * (2 * n_pad * PAD * 3 * PAD + 4 * n_pad * n_pad * PAD)
    cost = pl.CostEstimate(flops=flops, transcendentals=0,
                           bytes_accessed=operand_bytes)

    grid_spec = pltpu.PrefetchScalarGridSpec(
        num_scalar_prefetch=0,
        grid=(B,),
        in_specs=[
            pl.BlockSpec((1, n_pad, PAD), lambda b: (b, 0, 0)),       # x: per batch
            pl.BlockSpec((n_pad, n_pad), lambda b: (0, 0)),           # A1: resident
            pl.BlockSpec((n_pad, n_pad), lambda b: (0, 0)),           # A2: resident
            pl.BlockSpec((3, PAD, 3 * PAD), lambda b: (0, 0, 0)),     # W: resident
            pl.BlockSpec((3, 1, PAD), lambda b: (0, 0, 0)),           # b: resident
        ],
        out_specs=pl.BlockSpec((1, n_pad, PAD), lambda b: (b, 0, 0)),
    )

    out_pad = pl.pallas_call(
        _digcnib_kernel,
        out_shape=jax.ShapeDtypeStruct((B, n_pad, PAD), jnp.float32),
        grid_spec=grid_spec,
        compiler_params=pltpu.CompilerParams(
            dimension_semantics=("parallel",),
            vmem_limit_bytes=vmem_limit),
        cost_estimate=cost,
    )(x_pad, a1p, a2p, w_all, b_all)

    return out_pad


# ---------------------------------------------------------------------------
# Parameter / graph setup (deterministic, plain-JAX glue)
# ---------------------------------------------------------------------------
def _pad_to(arr, shape):
    return jnp.pad(arr, [(0, t - s) for s, t in zip(arr.shape, shape)])


def init_block_params(key, d_in, d_out):
    """Deterministic synthetic init; shapes match the PyTorch module (W as [in,out])."""
    assert d_in <= PAD and d_out <= PAD, (d_in, d_out)
    k_ln, k_w1, k_w2, k_bln = jax.random.split(key, 4)
    scale = (6.0 / (d_in + d_out)) ** 0.5
    b_scale = 1.0 / (d_in ** 0.5)
    return {
        "w_ln": jax.random.uniform(k_ln, (d_in, d_out), jnp.float32, -scale, scale),
        "b_ln": jax.random.uniform(k_bln, (1, d_out), jnp.float32, -b_scale, b_scale),
        "w1": jax.random.uniform(k_w1, (d_in, d_out), jnp.float32, -scale, scale),
        "b1": jnp.zeros((1, d_out), jnp.float32),
        "w2": jax.random.uniform(k_w2, (d_in, d_out), jnp.float32, -scale, scale),
        "b2": jnp.zeros((1, d_out), jnp.float32),
    }


def pack_params(raw_blocks, p=PAD):
    """Pack the 3 blocks into one bf16 weight tensor [3,P,3P] and one folded
    f32 bias tensor [3,1,P]."""
    ws, bs = [], []
    for pr in raw_blocks:
        w_cat = jnp.concatenate(
            [_pad_to(pr["w_ln"], (p, p)),
             _pad_to(pr["w1"], (p, p)),
             _pad_to(pr["w2"], (p, p))], axis=1)               # [P, 3P]
        ws.append(w_cat)
        bs.append(_pad_to(pr["b_ln"] + pr["b1"] + pr["b2"], (1, p)))
    w_all = jnp.stack(ws).astype(jnp.bfloat16)                 # [3, P, 3P]
    b_all = jnp.stack(bs)                                      # [3, 1, P] f32
    return w_all, b_all


def edges_to_dense(edge_index, edge_weight, n):
    """Densify a PyG-style edge list: A[dst, src] += w (scatter-add, like MessagePassing)."""
    src, dst = edge_index[0], edge_index[1]
    a = jnp.zeros((n, n), jnp.float32)
    return a.at[dst, src].add(edge_weight)


def reference_forward(x, a1, a2, raw_blocks):
    """Pure-JAX f32 reference of the 3 inception blocks (dropout identity in eval)."""
    h = x
    for pr in raw_blocks:
        x0 = h @ pr["w_ln"] + pr["b_ln"]
        x1 = a1 @ (h @ pr["w1"]) + pr["b1"]
        x2 = a2 @ (h @ pr["w2"]) + pr["b2"]
        h = x0 + x1 + x2
    return h


# ---------------------------------------------------------------------------
# Main
# ---------------------------------------------------------------------------
if __name__ == "__main__":
    # Small shapes consistent with the module's forward
    N = 16           # number of graph nodes
    B = 4            # independent node-feature batches sharing the graph/weights
    INPUT_DIM = 8    # args.input_dim
    HIDDEN = 32      # args.hidden
    EMBED_DIM = 16   # args.embed_dim

    key = jax.random.PRNGKey(0)
    k_x, k_e1, k_w1k, k_e2, k_w2k, k_p1, k_p2, k_p3 = jax.random.split(key, 8)

    # Node features (batch of independent feature matrices over the same graph)
    x_b = jax.random.normal(k_x, (B, N, INPUT_DIM), jnp.float32)

    # Synthetic directed edge lists standing in for get_appr_directed_adj /
    # get_second_directed_adj outputs.
    # TODO(synk): the approximate-PPR / second-order adjacency construction is
    # cached host-side preprocessing in the original code; deterministic synthetic
    # edge weights are substituted here.
    num_edges = 3 * N
    src1 = jax.random.randint(k_e1, (num_edges,), 0, N)
    dst1 = jnp.roll(src1, 1)
    w1 = jax.random.uniform(k_w1k, (num_edges,), jnp.float32, 0.1, 1.0)
    edge_index1 = jnp.stack([src1, dst1])

    src2 = jax.random.randint(k_e2, (num_edges,), 0, N)
    dst2 = jnp.roll(src2, 3)
    w2 = jax.random.uniform(k_w2k, (num_edges,), jnp.float32, 0.1, 1.0)
    edge_index2 = jnp.stack([src2, dst2])

    a1 = edges_to_dense(edge_index1, w1, N)
    a2 = edges_to_dense(edge_index2, w2, N)

    # Three inception blocks: (input->hidden), (hidden->hidden), (hidden->embed)
    raw_blocks = [
        init_block_params(k_p1, INPUT_DIM, HIDDEN),
        init_block_params(k_p2, HIDDEN, HIDDEN),
        init_block_params(k_p3, HIDDEN, EMBED_DIM),
    ]
    w_all, b_all = pack_params(raw_blocks)

    out_pad = digcnib_forward(x_b, a1, a2, w_all, b_all)
    out_pad = jax.block_until_ready(out_pad)

    out = out_pad[:, :N, :EMBED_DIM]
    assert out.shape == (B, N, EMBED_DIM), out.shape
    assert out.dtype == jnp.float32
    assert bool(jnp.all(jnp.isfinite(out)))

    # Correctness check against the pure-JAX f32 reference of the module semantics.
    # (bf16 MXU inputs -> relaxed, scale-relative tolerance per review.)
    ref = jnp.stack([reference_forward(x_b[i], a1, a2, raw_blocks) for i in range(B)])
    err = float(jnp.max(jnp.abs(out - ref)))
    denom = float(jnp.max(jnp.abs(ref)))
    assert err <= 5e-2 * denom + 5e-2, (err, denom)

    print("KERNEL_OK")
</pallas_src>

<mosaic_0001>
module attributes {stable_mosaic.version = 11 : i64} {
  func.func @_digcnib_kernel(%arg0: i32, %arg1: memref<1x16x128xf32, #tpu.memory_space<vmem>>, %arg2: memref<16x16xbf16, #tpu.memory_space<vmem>>, %arg3: memref<16x16xbf16, #tpu.memory_space<vmem>>, %arg4: memref<3x128x384xbf16, #tpu.memory_space<vmem>>, %arg5: memref<3x1x128xf32, #tpu.memory_space<vmem>>, %arg6: memref<1x16x128xf32, #tpu.memory_space<vmem>>) attributes {dimension_semantics = [#tpu.dimension_semantics<parallel>], iteration_bounds = array<i64: 4>, scalar_prefetch = 0 : i64, scratch_operands = 0 : i64, tpu.core_type = #tpu.core_type<tc>, window_params = [{transform_indices = @transform_0, window_bounds = array<i64: 1, 16, 128>}, {pipeline_mode = #tpu.pipeline_mode<synchronous>, transform_indices = @transform_1, window_bounds = array<i64: 16, 16>}, {pipeline_mode = #tpu.pipeline_mode<synchronous>, transform_indices = @transform_2, window_bounds = array<i64: 16, 16>}, {pipeline_mode = #tpu.pipeline_mode<synchronous>, transform_indices = @transform_3, window_bounds = array<i64: 3, 128, 384>}, {pipeline_mode = #tpu.pipeline_mode<synchronous>, transform_indices = @transform_4, window_bounds = array<i64: 3, 1, 128>}, {transform_indices = @transform_5, window_bounds = array<i64: 1, 16, 128>}]} {
    %c0 = arith.constant 0 : index
    %c0_0 = arith.constant 0 : index
    %0 = vector.load %arg2[%c0, %c0_0] : memref<16x16xbf16, #tpu.memory_space<vmem>>, vector<16x16xbf16>
    %c0_1 = arith.constant 0 : index
    %c0_2 = arith.constant 0 : index
    %1 = vector.load %arg3[%c0_1, %c0_2] : memref<16x16xbf16, #tpu.memory_space<vmem>>, vector<16x16xbf16>
    %c0_3 = arith.constant 0 : index
    %c0_4 = arith.constant 0 : index
    %c0_5 = arith.constant 0 : index
    %2 = vector.load %arg1[%c0_3, %c0_4, %c0_5] : memref<1x16x128xf32, #tpu.memory_space<vmem>>, vector<1x16x128xf32>
    %3 = vector.shape_cast %2 : vector<1x16x128xf32> to vector<16x128xf32>
    %c0_6 = arith.constant 0 : index
    %c0_7 = arith.constant 0 : index
    %c0_8 = arith.constant 0 : index
    %4 = vector.load %arg4[%c0_6, %c0_7, %c0_8] : memref<3x128x384xbf16, #tpu.memory_space<vmem>>, vector<1x128x384xbf16>
    %5 = vector.shape_cast %4 : vector<1x128x384xbf16> to vector<128x384xbf16>
    %6 = arith.truncf %3 : vector<16x128xf32> to vector<16x128xbf16>
    %cst = arith.constant dense<0.000000e+00> : vector<16x384xf32>
    %7 = tpu.matmul %6, %5, %cst {dimension_numbers = #tpu.dot_dimension_numbers<[1], [0], [0], [1], [0, 0, 1, 1], [], []>} : vector<16x128xbf16>, vector<128x384xbf16>, vector<16x384xf32> -> vector<16x384xf32>
    %8 = vector.extract_strided_slice %7 {offsets = [0, 0], sizes = [16, 128], strides = [1, 1]} : vector<16x384xf32> to vector<16x128xf32>
    %9 = vector.extract_strided_slice %7 {offsets = [0, 128], sizes = [16, 128], strides = [1, 1]} : vector<16x384xf32> to vector<16x128xf32>
    %10 = arith.truncf %9 : vector<16x128xf32> to vector<16x128xbf16>
    %cst_9 = arith.constant dense<0.000000e+00> : vector<16x128xf32>
    %11 = tpu.matmul %0, %10, %cst_9 {dimension_numbers = #tpu.dot_dimension_numbers<[1], [0], [0], [1], [0, 0, 1, 1], [], []>} : vector<16x16xbf16>, vector<16x128xbf16>, vector<16x128xf32> -> vector<16x128xf32>
    %12 = vector.extract_strided_slice %7 {offsets = [0, 256], sizes = [16, 128], strides = [1, 1]} : vector<16x384xf32> to vector<16x128xf32>
    %13 = arith.truncf %12 : vector<16x128xf32> to vector<16x128xbf16>
    %cst_10 = arith.constant dense<0.000000e+00> : vector<16x128xf32>
    %14 = tpu.matmul %1, %13, %cst_10 {dimension_numbers = #tpu.dot_dimension_numbers<[1], [0], [0], [1], [0, 0, 1, 1], [], []>} : vector<16x16xbf16>, vector<16x128xbf16>, vector<16x128xf32> -> vector<16x128xf32>
    %15 = arith.addf %11, %14 : vector<16x128xf32>
    %16 = arith.addf %8, %15 : vector<16x128xf32>
    %c0_11 = arith.constant 0 : index
    %c0_12 = arith.constant 0 : index
    %c0_13 = arith.constant 0 : index
    %17 = vector.load %arg5[%c0_11, %c0_12, %c0_13] : memref<3x1x128xf32, #tpu.memory_space<vmem>>, vector<1x1x128xf32>
    %18 = vector.shape_cast %17 : vector<1x1x128xf32> to vector<1x128xf32>
    %19 = vector.broadcast %18 : vector<1x128xf32> to vector<16x128xf32>
    %20 = arith.addf %16, %19 : vector<16x128xf32>
    %c1 = arith.constant 1 : index
    %c0_14 = arith.constant 0 : index
    %c0_15 = arith.constant 0 : index
    %21 = vector.load %arg4[%c1, %c0_14, %c0_15] : memref<3x128x384xbf16, #tpu.memory_space<vmem>>, vector<1x128x384xbf16>
    %22 = vector.shape_cast %21 : vector<1x128x384xbf16> to vector<128x384xbf16>
    %23 = arith.truncf %20 : vector<16x128xf32> to vector<16x128xbf16>
    %cst_16 = arith.constant dense<0.000000e+00> : vector<16x384xf32>
    %24 = tpu.matmul %23, %22, %cst_16 {dimension_numbers = #tpu.dot_dimension_numbers<[1], [0], [0], [1], [0, 0, 1, 1], [], []>} : vector<16x128xbf16>, vector<128x384xbf16>, vector<16x384xf32> -> vector<16x384xf32>
    %25 = vector.extract_strided_slice %24 {offsets = [0, 0], sizes = [16, 128], strides = [1, 1]} : vector<16x384xf32> to vector<16x128xf32>
    %26 = vector.extract_strided_slice %24 {offsets = [0, 128], sizes = [16, 128], strides = [1, 1]} : vector<16x384xf32> to vector<16x128xf32>
    %27 = arith.truncf %26 : vector<16x128xf32> to vector<16x128xbf16>
    %cst_17 = arith.constant dense<0.000000e+00> : vector<16x128xf32>
    %28 = tpu.matmul %0, %27, %cst_17 {dimension_numbers = #tpu.dot_dimension_numbers<[1], [0], [0], [1], [0, 0, 1, 1], [], []>} : vector<16x16xbf16>, vector<16x128xbf16>, vector<16x128xf32> -> vector<16x128xf32>
    %29 = vector.extract_strided_slice %24 {offsets = [0, 256], sizes = [16, 128], strides = [1, 1]} : vector<16x384xf32> to vector<16x128xf32>
    %30 = arith.truncf %29 : vector<16x128xf32> to vector<16x128xbf16>
    %cst_18 = arith.constant dense<0.000000e+00> : vector<16x128xf32>
    %31 = tpu.matmul %1, %30, %cst_18 {dimension_numbers = #tpu.dot_dimension_numbers<[1], [0], [0], [1], [0, 0, 1, 1], [], []>} : vector<16x16xbf16>, vector<16x128xbf16>, vector<16x128xf32> -> vector<16x128xf32>
    %32 = arith.addf %28, %31 : vector<16x128xf32>
    %33 = arith.addf %25, %32 : vector<16x128xf32>
    %c1_19 = arith.constant 1 : index
    %c0_20 = arith.constant 0 : index
    %c0_21 = arith.constant 0 : index
    %34 = vector.load %arg5[%c1_19, %c0_20, %c0_21] : memref<3x1x128xf32, #tpu.memory_space<vmem>>, vector<1x1x128xf32>
    %35 = vector.shape_cast %34 : vector<1x1x128xf32> to vector<1x128xf32>
    %36 = vector.broadcast %35 : vector<1x128xf32> to vector<16x128xf32>
    %37 = arith.addf %33, %36 : vector<16x128xf32>
    %c2 = arith.constant 2 : index
    %c0_22 = arith.constant 0 : index
    %c0_23 = arith.constant 0 : index
    %38 = vector.load %arg4[%c2, %c0_22, %c0_23] : memref<3x128x384xbf16, #tpu.memory_space<vmem>>, vector<1x128x384xbf16>
    %39 = vector.shape_cast %38 : vector<1x128x384xbf16> to vector<128x384xbf16>
    %40 = arith.truncf %37 : vector<16x128xf32> to vector<16x128xbf16>
    %cst_24 = arith.constant dense<0.000000e+00> : vector<16x384xf32>
    %41 = tpu.matmul %40, %39, %cst_24 {dimension_numbers = #tpu.dot_dimension_numbers<[1], [0], [0], [1], [0, 0, 1, 1], [], []>} : vector<16x128xbf16>, vector<128x384xbf16>, vector<16x384xf32> -> vector<16x384xf32>
    %42 = vector.extract_strided_slice %41 {offsets = [0, 0], sizes = [16, 128], strides = [1, 1]} : vector<16x384xf32> to vector<16x128xf32>
    %43 = vector.extract_strided_slice %41 {offsets = [0, 128], sizes = [16, 128], strides = [1, 1]} : vector<16x384xf32> to vector<16x128xf32>
    %44 = arith.truncf %43 : vector<16x128xf32> to vector<16x128xbf16>
    %cst_25 = arith.constant dense<0.000000e+00> : vector<16x128xf32>
    %45 = tpu.matmul %0, %44, %cst_25 {dimension_numbers = #tpu.dot_dimension_numbers<[1], [0], [0], [1], [0, 0, 1, 1], [], []>} : vector<16x16xbf16>, vector<16x128xbf16>, vector<16x128xf32> -> vector<16x128xf32>
    %46 = vector.extract_strided_slice %41 {offsets = [0, 256], sizes = [16, 128], strides = [1, 1]} : vector<16x384xf32> to vector<16x128xf32>
    %47 = arith.truncf %46 : vector<16x128xf32> to vector<16x128xbf16>
    %cst_26 = arith.constant dense<0.000000e+00> : vector<16x128xf32>
    %48 = tpu.matmul %1, %47, %cst_26 {dimension_numbers = #tpu.dot_dimension_numbers<[1], [0], [0], [1], [0, 0, 1, 1], [], []>} : vector<16x16xbf16>, vector<16x128xbf16>, vector<16x128xf32> -> vector<16x128xf32>
    %49 = arith.addf %45, %48 : vector<16x128xf32>
    %50 = arith.addf %42, %49 : vector<16x128xf32>
    %c2_27 = arith.constant 2 : index
    %c0_28 = arith.constant 0 : index
    %c0_29 = arith.constant 0 : index
    %51 = vector.load %arg5[%c2_27, %c0_28, %c0_29] : memref<3x1x128xf32, #tpu.memory_space<vmem>>, vector<1x1x128xf32>
    %52 = vector.shape_cast %51 : vector<1x1x128xf32> to vector<1x128xf32>
    %53 = vector.broadcast %52 : vector<1x128xf32> to vector<16x128xf32>
    %54 = arith.addf %50, %53 : vector<16x128xf32>
    %c0_30 = arith.constant 0 : index
    %c0_31 = arith.constant 0 : index
    %c0_32 = arith.constant 0 : index
    %55 = vector.load %arg6[%c0_30, %c0_31, %c0_32] : memref<1x16x128xf32, #tpu.memory_space<vmem>>, vector<1x16x128xf32>
    %56 = vector.shape_cast %55 : vector<1x16x128xf32> to vector<16x128xf32>
    %57 = vector.shape_cast %54 : vector<16x128xf32> to vector<1x16x128xf32>
    tpu.vector_store %arg6[%c0_30, %c0_31, %c0_32], %57 {strides = array<i32>} : memref<1x16x128xf32, #tpu.memory_space<vmem>>, vector<1x16x128xf32>,
    return
  }
  func.func @transform_0(%arg0: i32) -> (i32, i32, i32) {
    %c0_i32 = arith.constant 0 : i32
    %c0_i32_0 = arith.constant 0 : i32
    %c0_i32_1 = arith.constant 0 : i32
    return %arg0, %c0_i32, %c0_i32_0 : i32, i32, i32
  }
  func.func @transform_1(%arg0: i32) -> (i32, i32) {
    %c0_i32 = arith.constant 0 : i32
    %c0_i32_0 = arith.constant 0 : i32
    %c0_i32_1 = arith.constant 0 : i32
    return %c0_i32, %c0_i32_0 : i32, i32
  }
  func.func @transform_2(%arg0: i32) -> (i32, i32) {
    %c0_i32 = arith.constant 0 : i32
    %c0_i32_0 = arith.constant 0 : i32
    %c0_i32_1 = arith.constant 0 : i32
    return %c0_i32, %c0_i32_0 : i32, i32
  }
  func.func @transform_3(%arg0: i32) -> (i32, i32, i32) {
    %c0_i32 = arith.constant 0 : i32
    %c0_i32_0 = arith.constant 0 : i32
    %c0_i32_1 = arith.constant 0 : i32
    %c0_i32_2 = arith.constant 0 : i32
    return %c0_i32, %c0_i32_0, %c0_i32_1 : i32, i32, i32
  }
  func.func @transform_4(%arg0: i32) -> (i32, i32, i32) {
    %c0_i32 = arith.constant 0 : i32
    %c0_i32_0 = arith.constant 0 : i32
    %c0_i32_1 = arith.constant 0 : i32
    %c0_i32_2 = arith.constant 0 : i32
    return %c0_i32, %c0_i32_0, %c0_i32_1 : i32, i32, i32
  }
  func.func @transform_5(%arg0: i32) -> (i32, i32, i32) {
    %c0_i32 = arith.constant 0 : i32
    %c0_i32_0 = arith.constant 0 : i32
    %c0_i32_1 = arith.constant 0 : i32
    return %arg0, %c0_i32, %c0_i32_0 : i32, i32, i32
  }
}

</mosaic_0001>

<llo_original>
// kernel: tpu_custom_call.1
$region0: #{tpu_custom_call.1}
  #allocation0 [shape = 'u32[]', space=smem, size = 0x4, offset = 0x4, fixed_abs, tag = 'smem constant byte address 0x4 - core index']
  #allocation1 [shape = 'u32[72,128]{1,0:T(1,128)}', space=vmem, size = 0x9000, scoped, tag = 'internal scratch']
  %s0 = inlined_call_operand.hbm [shape: f32[4,16,128], index: 0, kind: input, shape index: {}]
  %s1 = inlined_call_operand.hbm [shape: bf16[16,16], index: 1, kind: input, shape index: {}]
  %s2 = inlined_call_operand.hbm [shape: bf16[16,16], index: 2, kind: input, shape index: {}]
  %s3 = inlined_call_operand.hbm [shape: bf16[3,128,384], index: 3, kind: input, shape index: {}]
  %s4 = inlined_call_operand.vmem [shape: f32[3,1,128], index: 4, kind: input, shape index: {}]
  %s5 = inlined_call_operand.hbm [shape: f32[4,16,128], index: 5, kind: output, shape index: {}]
  %s6 = sld [smem:[#allocation0]]
  $region69: #{tpu_custom_call.1} parent=0
    _
  %s8 = ssub.s32 1, %s6
  %s9 = scalar_select 0, %s8, %s6
  $region1: #{tpu_custom_call.1} parent=0
    #allocation2 [shape = 'u8[16384]{0}', space=vmem, size = 0x4000, scoped, tag = 'input window, operand 0']
    #allocation3 [shape = 's32[2]{0}', space=sflag, size = 0x8, scoped, tag = 'scoped memory for tpu_custom_call.1']
    #allocation4 [shape = 's32[2]{0}', space=sflag, size = 0x8, scoped, tag = 'scoped memory for tpu_custom_call.1']
    #allocation5 [shape = 'u8[4096]{0}', space=vmem, size = 0x1000, scoped, tag = 'input window, operand 1, single buffered']
    #allocation6 [shape = 's32[1]{0}', space=sflag, size = 0x4, scoped, tag = 'scoped memory for tpu_custom_call.1']
    #allocation7 [shape = 'u8[4096]{0}', space=vmem, size = 0x1000, scoped, tag = 'input window, operand 2, single buffered']
    #allocation8 [shape = 'u8[294912]{0}', space=vmem, size = 0x48000, scoped, tag = 'input window, operand 3, single buffered']
    #allocation9 [shape = 's32[1]{0}', space=sflag, size = 0x4, scoped, tag = 'scoped memory for tpu_custom_call.1']
    #allocation10 [shape = 'u8[16384]{0}', space=vmem, size = 0x4000, scoped, tag = 'output window, operand 0']
    %10 = vsyncpa [#allocation3], 0
    %s11 = scalar_lea.sflag [#allocation3], 1
    %12 = vsyncpa %s11, 0
    %13 = vsyncpa [#allocation6], 0
    %14 = vsyncpa [#allocation9], 0
    %15 = vsyncpa [#allocation4], 0
    %s16 = scalar_lea.sflag [#allocation4], 1
    %17 = vsyncpa %s16, 0
    loop: start=0, step=1, limit=6
    $region2: #{tpu_custom_call.1} parent=1 // loop_pre_header
      _
    $region3: #{tpu_custom_call.1} parent=1 // loop_header
      %s19 = sphi 0, %s23
      %p20 = scmp.ge.s32.totalorder %s19, 6
      %s29 = sphi 0, %s31
      %s32 = sphi 0, %s29
      %s33 = sphi 0, %s32
      %s49 = sphi 0, %s33
      %s53 = sphi 0, %s53
      %s55 = sphi 0, %s53
      %s56 = sphi 0, %s55
      %s70 = sphi 0, %s56
      %s74 = sphi 0, %s74
      %s76 = sphi 0, %s74
      %s77 = sphi 0, %s76
      %s91 = sphi 0, %s77
      %s95 = sphi 0, %s95
      %s97 = sphi 0, %s95
      %s98 = sphi 0, %s97
      %s112 = sphi 0, %s98
      %s116 = sphi 0, %s116
      %s118 = sphi 0, %s116
      %s119 = sphi 0, %s118
      %s133 = sphi 0, %s119
      %s139 = sphi 0, %s141
      %s142 = sphi 0, %s139
      %s143 = sphi 0, %s142
      %s159 = sphi 0, %s143
    $region4: #{tpu_custom_call.1} parent=1 // loop_header_branch
      %22 = sbr.rel (%p20) target = $region8
    $region5: #{tpu_custom_call.1} parent=1 // loop_body
      %s24 = ssub.s32 %s19, 1
      %s25 = ssub.s32 %s19, 2
      %s26 = sadd.s32 %s19, 1
      %s27 = ssub.s32 %s19, %s26
      %p28 = scmp.eq.s32.totalorder %s27, 0
      %s30 = sadd.s32 %s29, 1
      %s31 = scalar_select %p28, %s29, %s30
      %p34 = pneg %p28
      %p35 = scmp.eq.s32.totalorder %s19, 3
      %p36 = por %p34, %p35
      %p37 = scmp.ne.s32.totalorder %s29, %s32
      %p38 = scmp.eq.s32.totalorder %s19, 0
      %p39 = por %p37, %p38
      %p40 = scmp.ne.s32.totalorder %s29, %s32
      %p41 = scmp.eq.s32.totalorder %s24, 3
      %p42 = por %p40, %p41
      %p43 = scmp.ne.s32.totalorder %s32, %s33
      %p44 = scmp.eq.s32.totalorder %s24, 0
      %p45 = por %p43, %p44
      %p46 = scmp.ne.s32.totalorder %s32, %s33
      %p47 = scmp.eq.s32.totalorder %s25, 3
      %p48 = por %p46, %p47
      %p50 = scmp.ne.s32.totalorder %s33, %s49
      %p51 = scmp.eq.s32.totalorder %s25, 0
      %p52 = por %p50, %p51
      %s54 = sadd.s32 %s53, 1
      %p57 = scmp.eq.s32.totalorder %s19, 3
      %p58 = scmp.ne.s32.totalorder %s53, %s55
      %p59 = scmp.eq.s32.totalorder %s19, 0
      %p60 = por %p58, %p59
      %p61 = scmp.ne.s32.totalorder %s53, %s55
      %p62 = scmp.eq.s32.totalorder %s24, 3
      %p63 = por %p61, %p62
      %p64 = scmp.ne.s32.totalorder %s55, %s56
      %p65 = scmp.eq.s32.totalorder %s24, 0
      %p66 = por %p64, %p65
      %p67 = scmp.ne.s32.totalorder %s55, %s56
      %p68 = scmp.eq.s32.totalorder %s25, 3
      %p69 = por %p67, %p68
      %p71 = scmp.ne.s32.totalorder %s56, %s70
      %p72 = scmp.eq.s32.totalorder %s25, 0
      %p73 = por %p71, %p72
      %s75 = sadd.s32 %s74, 1
      %p78 = scmp.eq.s32.totalorder %s19, 3
      %p79 = scmp.ne.s32.totalorder %s74, %s76
      %p80 = scmp.eq.s32.totalorder %s19, 0
      %p81 = por %p79, %p80
      %p82 = scmp.ne.s32.totalorder %s74, %s76
      %p83 = scmp.eq.s32.totalorder %s24, 3
      %p84 = por %p82, %p83
      %p85 = scmp.ne.s32.totalorder %s76, %s77
      %p86 = scmp.eq.s32.totalorder %s24, 0
      %p87 = por %p85, %p86
      %p88 = scmp.ne.s32.totalorder %s76, %s77
      %p89 = scmp.eq.s32.totalorder %s25, 3
      %p90 = por %p88, %p89
      %p92 = scmp.ne.s32.totalorder %s77, %s91
      %p93 = scmp.eq.s32.totalorder %s25, 0
      %p94 = por %p92, %p93
      %s96 = sadd.s32 %s95, 1
      %p99 = scmp.eq.s32.totalorder %s19, 3
      %p100 = scmp.ne.s32.totalorder %s95, %s97
      %p101 = scmp.eq.s32.totalorder %s19, 0
      %p102 = por %p100, %p101
      %p103 = scmp.ne.s32.totalorder %s95, %s97
      %p104 = scmp.eq.s32.totalorder %s24, 3
      %p105 = por %p103, %p104
      %p106 = scmp.ne.s32.totalorder %s97, %s98
      %p107 = scmp.eq.s32.totalorder %s24, 0
      %p108 = por %p106, %p107
      %p109 = scmp.ne.s32.totalorder %s97, %s98
      %p110 = scmp.eq.s32.totalorder %s25, 3
      %p111 = por %p109, %p110
      %p113 = scmp.ne.s32.totalorder %s98, %s112
      %p114 = scmp.eq.s32.totalorder %s25, 0
      %p115 = por %p113, %p114
      %s117 = sadd.s32 %s116, 1
      %p120 = scmp.eq.s32.totalorder %s19, 3
      %p121 = scmp.ne.s32.totalorder %s116, %s118
      %p122 = scmp.eq.s32.totalorder %s19, 0
      %p123 = por %p121, %p122
      %p124 = scmp.ne.s32.totalorder %s116, %s118
      %p125 = scmp.eq.s32.totalorder %s24, 3
      %p126 = por %p124, %p125
      %p127 = scmp.ne.s32.totalorder %s118, %s119
      %p128 = scmp.eq.s32.totalorder %s24, 0
      %p129 = por %p127, %p128
      %p130 = scmp.ne.s32.totalorder %s118, %s119
      %p131 = scmp.eq.s32.totalorder %s25, 3
      %p132 = por %p130, %p131
      %p134 = scmp.ne.s32.totalorder %s119, %s133
      %p135 = scmp.eq.s32.totalorder %s25, 0
      %p136 = por %p134, %p135
      %s137 = ssub.s32 %s19, %s26
      %p138 = scmp.eq.s32.totalorder %s137, 0
      %s140 = sadd.s32 %s139, 1
      %s141 = scalar_select %p138, %s139, %s140
      %p144 = pneg %p138
      %p145 = scmp.eq.s32.totalorder %s19, 3
      %p146 = por %p144, %p145
      %p147 = scmp.ne.s32.totalorder %s139, %s142
      %p148 = scmp.eq.s32.totalorder %s19, 0
      %p149 = por %p147, %p148
      %p150 = scmp.ne.s32.totalorder %s139, %s142
      %p151 = scmp.eq.s32.totalorder %s24, 3
      %p152 = por %p150, %p151
      %p153 = scmp.ne.s32.totalorder %s142, %s143
      %p154 = scmp.eq.s32.totalorder %s24, 0
      %p155 = por %p153, %p154
      %p156 = scmp.ne.s32.totalorder %s142, %s143
      %p157 = scmp.eq.s32.totalorder %s25, 3
      %p158 = por %p156, %p157
      %p160 = scmp.ne.s32.totalorder %s143, %s159
      %p161 = scmp.eq.s32.totalorder %s25, 0
      %p162 = por %p160, %p161
      %p163 = scmp.le.s32.totalorder 1, %s19
      %p164 = scmp.lt.s32.totalorder %s19, 5
      %p165 = pnand %p163, %p164
      %p166 = pneg %p165
      // Predicated region
      $region9: #{tpu_custom_call.1} parent=5 // pred_check
        _
      $region10: #{tpu_custom_call.1} parent=5 // pred_check_branch
        %168 = sbr.rel (%p165) target = $region12
      $region11: #{tpu_custom_call.1} parent=5 // pred_region
        %s169 = ssub.s32 %s19, 1
        // Predicated region
        $region13: #{tpu_custom_call.1} parent=11 // pred_check
          %p170 = pneg %p66
        $region14: #{tpu_custom_call.1} parent=11 // pred_check_branch
          %172 = sbr.rel (%p170) target = $region16
        $region15: #{tpu_custom_call.1} parent=11 // pred_region
          %174 = vsyncadd [#allocation6], 0
          %s175 = sshll.u32 %s1, 4
          %s176 = int_to_ptr.hbm [resolvable:$true] %s175
          %s177 = sshll.u32 [#allocation5], 4
          %s178 = int_to_ptr.vmem [resolvable:$true] %s177
          %183 = dma.hbm_to_vmem [thread:$0]  %s176, 128, %s178, [#allocation6], 64, 64, 4
        $region16: #{tpu_custom_call.1} parent=11 // pred_fallthru
          _
        // Predicated region
        $region17: #{tpu_custom_call.1} parent=11 // pred_check
          %p184 = pneg %p87
        $region18: #{tpu_custom_call.1} parent=11 // pred_check_branch
          %186 = sbr.rel (%p184) target = $region20
        $region19: #{tpu_custom_call.1} parent=11 // pred_region
          %188 = vsyncadd [#allocation6], 0
          %s189 = sshll.u32 %s2, 4
          %s190 = int_to_ptr.hbm [resolvable:$true] %s189
          %s191 = sshll.u32 [#allocation7], 4
          %s192 = int_to_ptr.vmem [resolvable:$true] %s191
          %197 = dma.hbm_to_vmem [thread:$0]  %s190, 128, %s192, [#allocation6], 64, 64, 4
        $region20: #{tpu_custom_call.1} parent=11 // pred_fallthru
          _
        // Predicated region
        $region21: #{tpu_custom_call.1} parent=11 // pred_check
          %p198 = pneg %p108
        $region22: #{tpu_custom_call.1} parent=11 // pred_check_branch
          %200 = sbr.rel (%p198) target = $region24
        $region23: #{tpu_custom_call.1} parent=11 // pred_region
          %202 = vsyncadd [#allocation9], 0
          %s203 = sshll.u32 %s3, 4
          %s204 = int_to_ptr.hbm [resolvable:$true] %s203
          %s205 = sshll.u32 [#allocation8], 4
          %s206 = int_to_ptr.vmem [resolvable:$true] %s205
          %211 = dma.hbm_to_vmem [thread:$0]  %s204, 9216, %s206, [#allocation9], 192, 192, 12
        $region24: #{tpu_custom_call.1} parent=11 // pred_fallthru
          _
        // Predicated region
        $region25: #{tpu_custom_call.1} parent=11 // pred_check
          %p212 = pneg %p129
        $region26: #{tpu_custom_call.1} parent=11 // pred_check_branch
          %214 = sbr.rel (%p212) target = $region28
        $region27: #{tpu_custom_call.1} parent=11 // pred_region
          _
        $region28: #{tpu_custom_call.1} parent=11 // pred_fallthru
          _
      $region12: #{tpu_custom_call.1} parent=5 // pred_fallthru
        _
      %p215 = scmp.lt.s32.totalorder %s19, 4
      // Predicated region
      $region29: #{tpu_custom_call.1} parent=5 // pred_check
        %p216 = pneg %p215
      $region30: #{tpu_custom_call.1} parent=5 // pred_check_branch
        %218 = sbr.rel (%p216) target = $region32
      $region31: #{tpu_custom_call.1} parent=5 // pred_region
        // Predicated region
        $region33: #{tpu_custom_call.1} parent=31 // pred_check
          %p219 = pneg %p39
        $region34: #{tpu_custom_call.1} parent=31 // pred_check_branch
          %221 = sbr.rel (%p219) target = $region36
        $region35: #{tpu_custom_call.1} parent=31 // pred_region
          %s222 = sand.u32 %s29, 1
          %s223 = scalar_lea.sflag [#allocation3], %s222
          %s224 = sand.u32 %s29, 1
          %s225 = smul.addr %s224, 16
          %s226 = scalar_lea.vmem [#allocation2], %s225
          %228 = vsyncadd %s223, 0
          %s229 = smul.addr %s19, 2
          %s230 = smul.addr %s229, 8
          %s231 = scalar_lea.hbm %s0, %s230
          %s232 = sshll.u32 %s231, 4
          %s233 = int_to_ptr.hbm [resolvable:$true] %s232
          %s234 = sshll.u32 %s226, 4
          %s235 = int_to_ptr.vmem [resolvable:$true] %s234
          %240 = dma.hbm_to_vmem [thread:$0]  %s233, 256, %s235, %s223, 128, 128, 8
        $region36: #{tpu_custom_call.1} parent=31 // pred_fallthru
          _
      $region32: #{tpu_custom_call.1} parent=5 // pred_fallthru
        _
      %p241 = scmp.le.s32.totalorder 1, %s19
      %p242 = scmp.lt.s32.totalorder %s19, 5
      %p243 = pnand %p241, %p242
      %p244 = pneg %p243
      // Predicated region
      $region37: #{tpu_custom_call.1} parent=5 // pred_check
        _
      $region38: #{tpu_custom_call.1} parent=5 // pred_check_branch
        %246 = sbr.rel (%p243) target = $region40
      $region39: #{tpu_custom_call.1} parent=5 // pred_region
        %s247 = ssub.s32 %s19, 1
        %s248 = sand.u32 %s32, 1
        %s249 = scalar_lea.sflag [#allocation3], %s248
        %s250 = sand.u32 %s32, 1
        %s251 = smul.addr %s250, 16
        %s252 = scalar_lea.vmem [#allocation2], %s251
        // Predicated region
        $region41: #{tpu_custom_call.1} parent=39 // pred_check
          %p253 = pneg %p45
        $region42: #{tpu_custom_call.1} parent=39 // pred_check_branch
          %255 = sbr.rel (%p253) target = $region44
        $region43: #{tpu_custom_call.1} parent=39 // pred_region
          %257 = dma.done %s249, 256
        $region44: #{tpu_custom_call.1} parent=39 // pred_fallthru
          _
        // Predicated region
        $region45: #{tpu_custom_call.1} parent=39 // pred_check
          %p258 = pneg %p66
        $region46: #{tpu_custom_call.1} parent=39 // pred_check_branch
          %260 = sbr.rel (%p258) target = $region48
        $region47: #{tpu_custom_call.1} parent=39 // pred_region
          %262 = dma.done [#allocation6], 128
        $region48: #{tpu_custom_call.1} parent=39 // pred_fallthru
          _
        // Predicated region
        $region49: #{tpu_custom_call.1} parent=39 // pred_check
          %p263 = pneg %p87
        $region50: #{tpu_custom_call.1} parent=39 // pred_check_branch
          %265 = sbr.rel (%p263) target = $region52
        $region51: #{tpu_custom_call.1} parent=39 // pred_region
          %267 = dma.done [#allocation6], 128
        $region52: #{tpu_custom_call.1} parent=39 // pred_fallthru
          _
        // Predicated region
        $region53: #{tpu_custom_call.1} parent=39 // pred_check
          %p268 = pneg %p108
        $region54: #{tpu_custom_call.1} parent=39 // pred_check_branch
          %270 = sbr.rel (%p268) target = $region56
        $region55: #{tpu_custom_call.1} parent=39 // pred_region
          %272 = dma.done [#allocation9], 9216
        $region56: #{tpu_custom_call.1} parent=39 // pred_fallthru
          _
        %s273 = sand.u32 %s32, 1
        %s274 = scalar_lea.sflag [#allocation3], %s273
        %s275 = sand.u32 %s32, 1
        %s276 = smul.addr %s275, 16
        %s277 = scalar_lea.vmem [#allocation2], %s276
        %p278 = pneg %p45
        %p279 = pneg %p42
        %p280 = pneg %p66
        %p281 = pneg %p63
        %p282 = pneg %p87
        %p283 = pneg %p84
        %p284 = pneg %p108
        %p285 = pneg %p105
        %p286 = pneg %p129
        %p287 = pneg %p126
        %p288 = pneg %p155
        %p289 = pneg %p152
        %s290 = sand.u32 %s142, 1
        %s291 = scalar_lea.sflag [#allocation4], %s290
        %s292 = sand.u32 %s142, 1
        %s293 = smul.addr %s292, 16
        %s294 = scalar_lea.vmem [#allocation10], %s293
        %v296 = vld [vmem:[#allocation5] sm:$0xf]
        %v297 = vld [vmem:[#allocation5 + $0x4] sm:$0xf]
        %v298 = vld [vmem:[#allocation7] sm:$0xf]
        %v299 = vld [vmem:[#allocation7 + $0x4] sm:$0xf]
        %v300 = vld [vmem:[%s252] sm:$0xff]
        %v301 = vld [vmem:[%s252 + $0x8] sm:$0xff]
        %v302 = vld [vmem:[#allocation8] sm:$0xff]
        %v303 = vld [vmem:[#allocation8 + $0x8] sm:$0xf]
        %v304 = vld [vmem:[#allocation8 + $0xc] sm:$0xff]
        %v305 = vld [vmem:[#allocation8 + $0x14] sm:$0xf]
        %v306 = vld [vmem:[#allocation8 + $0x18] sm:$0xff]
        %v307 = vld [vmem:[#allocation8 + $0x20] sm:$0xf]
        %v308 = vld [vmem:[#allocation8 + $0x24] sm:$0xff]
        %v309 = vld [vmem:[#allocation8 + $0x2c] sm:$0xf]
        %v310 = vld [vmem:[#allocation8 + $0x30] sm:$0xff]
        %v311 = vld [vmem:[#allocation8 + $0x38] sm:$0xf]
        %v312 = vld [vmem:[#allocation8 + $0x3c] sm:$0xff]
        %v313 = vld [vmem:[#allocation8 + $0x44] sm:$0xf]
        %v314 = vld [vmem:[#allocation8 + $0x48] sm:$0xff]
        %v315 = vld [vmem:[#allocation8 + $0x50] sm:$0xf]
        %v316 = vld [vmem:[#allocation8 + $0x54] sm:$0xff]
        %v317 = vld [vmem:[#allocation8 + $0x5c] sm:$0xf]
        %v318 = vld [vmem:[#allocation8 + $0x60] sm:$0xff]
        %v319 = vld [vmem:[#allocation8 + $0x68] sm:$0xf]
        %v320 = vld [vmem:[#allocation8 + $0x6c] sm:$0xff]
        %v321 = vld [vmem:[#allocation8 + $0x74] sm:$0xf]
        %v322 = vld [vmem:[#allocation8 + $0x78] sm:$0xff]
        %v323 = vld [vmem:[#allocation8 + $0x80] sm:$0xf]
        %v324 = vld [vmem:[#allocation8 + $0x84] sm:$0xff]
        %v325 = vld [vmem:[#allocation8 + $0x8c] sm:$0xf]
        %v326 = vld [vmem:[#allocation8 + $0x90] sm:$0xff]
        %v327 = vld [vmem:[#allocation8 + $0x98] sm:$0xf]
        %v328 = vld [vmem:[#allocation8 + $0x9c] sm:$0xff]
        %v329 = vld [vmem:[#allocation8 + $0xa4] sm:$0xf]
        %v330 = vld [vmem:[#allocation8 + $0xa8] sm:$0xff]
        %v331 = vld [vmem:[#allocation8 + $0xb0] sm:$0xf]
        %v332 = vld [vmem:[#allocation8 + $0xb4] sm:$0xff]
        %v333 = vld [vmem:[#allocation8 + $0xbc] sm:$0xf]
        %v334 = vpack.c.bf16 %v301, %v300
        %v367 = vunpack.c.l.b16 %v302
        %v368 = vunpack.c.h.b16 %v302
        %v369 = vunpack.c.l.b16 %v303
        %v370 = vunpack.c.l.b16 %v304
        %v371 = vunpack.c.h.b16 %v304
        %v372 = vunpack.c.l.b16 %v305
        %v373 = vunpack.c.l.b16 %v306
        %v374 = vunpack.c.h.b16 %v306
        %v375 = vunpack.c.l.b16 %v307
        %v376 = vunpack.c.l.b16 %v308
        %v377 = vunpack.c.h.b16 %v308
        %v378 = vunpack.c.l.b16 %v309
        %v379 = vunpack.c.l.b16 %v310
        %v380 = vunpack.c.h.b16 %v310
        %v381 = vunpack.c.l.b16 %v311
        %v382 = vunpack.c.l.b16 %v312
        %v383 = vunpack.c.h.b16 %v312
        %v384 = vunpack.c.l.b16 %v313
        %v385 = vunpack.c.l.b16 %v314
        %v386 = vunpack.c.h.b16 %v314
        %v387 = vunpack.c.l.b16 %v315
        %v388 = vunpack.c.l.b16 %v316
        %v389 = vunpack.c.h.b16 %v316
        %v390 = vunpack.c.l.b16 %v317
        %v391 = vunpack.c.l.b16 %v318
        %v392 = vunpack.c.h.b16 %v318
        %v393 = vunpack.c.l.b16 %v319
        %v394 = vunpack.c.l.b16 %v320
        %v395 = vunpack.c.h.b16 %v320
        %v396 = vunpack.c.l.b16 %v321
        %v397 = vunpack.c.l.b16 %v322
        %v398 = vunpack.c.h.b16 %v322
        %v399 = vunpack.c.l.b16 %v323
        %v400 = vunpack.c.l.b16 %v324
        %v401 = vunpack.c.h.b16 %v324
        %v402 = vunpack.c.l.b16 %v325
        %v403 = vunpack.c.l.b16 %v326
        %v404 = vunpack.c.h.b16 %v326
        %v405 = vunpack.c.l.b16 %v327
        %v406 = vunpack.c.l.b16 %v328
        %v407 = vunpack.c.h.b16 %v328
        %v408 = vunpack.c.l.b16 %v329
        %v409 = vunpack.c.l.b16 %v330
        %v410 = vunpack.c.h.b16 %v330
        %v411 = vunpack.c.l.b16 %v331
        %v412 = vunpack.c.l.b16 %v332
        %v413 = vunpack.c.h.b16 %v332
        %v414 = vunpack.c.l.b16 %v333
        %v415 = vpack.c.b16 %v370, %v367
        %v416 = vpack.c.b16 %v371, %v368
        %v417 = vpack.c.b16 %v372, %v369
        %v418 = vpack.c.b16 %v376, %v373
        %v419 = vpack.c.b16 %v377, %v374
        %v420 = vpack.c.b16 %v378, %v375
        %v421 = vpack.c.b16 %v382, %v379
        %v422 = vpack.c.b16 %v383, %v380
        %v423 = vpack.c.b16 %v384, %v381
        %v424 = vpack.c.b16 %v388, %v385
        %v425 = vpack.c.b16 %v389, %v386
        %v426 = vpack.c.b16 %v390, %v387
        %v427 = vpack.c.b16 %v394, %v391
        %v428 = vpack.c.b16 %v395, %v392
        %v429 = vpack.c.b16 %v396, %v393
        %v430 = vpack.c.b16 %v400, %v397
        %v431 = vpack.c.b16 %v401, %v398
        %v432 = vpack.c.b16 %v402, %v399
        %v433 = vpack.c.b16 %v406, %v403
        %v434 = vpack.c.b16 %v407, %v404
        %v435 = vpack.c.b16 %v408, %v405
        %v436 = vpack.c.b16 %v412, %v409
        %v437 = vpack.c.b16 %v413, %v410
        %v438 = vpack.c.b16 %v414, %v411
        %463 = vmatpush.bf16.msra.mxu0 %v436
        %464 = vmatpush.bf16.msra.mxu0 %v433
        %465 = vmatpush.bf16.msra.mxu0 %v430
        %466 = vmatpush.bf16.msra.mxu0 %v427
        %467 = vmatpush.bf16.msra.mxu0 %v424
        %468 = vmatpush.bf16.msra.mxu0 %v421
        %469 = vmatpush.bf16.msra.mxu0 %v418
        %470 = vmatpush.bf16.msra.mxu0 %v415
        %471 = vmatmul.bf16.gmra.mxu0 %v334
        %v472 = vpop.f32.mrf.mxu0
        %v473 = vadd.f32 0.0, %v472
        %v474 = vpop.f32.mrf.mxu0
        %v475 = vadd.f32 0.0, %v474
        %476 = vdwg.mxu0
        %477 = vmatpush.bf16.msra.mxu0 %v437
        %478 = vmatpush.bf16.msra.mxu0 %v434
        %479 = vmatpush.bf16.msra.mxu0 %v431
        %480 = vmatpush.bf16.msra.mxu0 %v428
        %481 = vmatpush.bf16.msra.mxu0 %v425
        %482 = vmatpush.bf16.msra.mxu0 %v422
        %483 = vmatpush.bf16.msra.mxu0 %v419
        %484 = vmatpush.bf16.msra.mxu0 %v416
        %485 = vmatmul.bf16.gmra.mxu0 %v334
        %v486 = vpop.f32.mrf.mxu0
        %v487 = vadd.f32 0.0, %v486
        %v488 = vpop.f32.mrf.mxu0
        %v489 = vadd.f32 0.0, %v488
        %490 = vdwg.mxu0
        %491 = vmatpush.bf16.msra.mxu0 %v438
        %492 = vmatpush.bf16.msra.mxu0 %v435
        %493 = vmatpush.bf16.msra.mxu0 %v432
        %494 = vmatpush.bf16.msra.mxu0 %v429
        %495 = vmatpush.bf16.msra.mxu0 %v426
        %496 = vmatpush.bf16.msra.mxu0 %v423
        %497 = vmatpush.bf16.msra.mxu0 %v420
        %498 = vmatpush.bf16.msra.mxu0 %v417
        %499 = vmatmul.bf16.gmra.mxu0 %v334
        %v500 = vpop.f32.mrf.mxu0
        %v501 = vadd.f32 0.0, %v500
        %v502 = vpop.f32.mrf.mxu0
        %v503 = vadd.f32 0.0, %v502
        %504 = vdwg.mxu0
        %v505 = vpack.c.bf16 %v489, %v487
        %v506 = vpack.c.bf16 %v503, %v501
        %v509 = vunpack.c.l.b16 %v298
        %v510 = vunpack.c.l.b16 %v299
        %v511 = vpack.c.b16 %v510, %v509
        %vm512 = vcmask 130048
        %v514 = vsel %vm512, %v511, 0
        %516 = vmatpush.bf16.msra.mxu0 0
        %517 = vmatpush.bf16.msra.mxu0 0
        %518 = vmatpush.bf16.msra.mxu0 0
        %519 = vmatpush.bf16.msra.mxu0 0
        %520 = vmatpush.bf16.msra.mxu0 0
        %521 = vmatpush.bf16.msra.mxu0 0
        %522 = vmatpush.bf16.msra.mxu0 0
        %523 = vmatpush.bf16.msra.mxu0 %v506
        %524 = vmatmul.bf16.gmra.mxu0 %v514
        %v525 = vpop.f32.mrf.mxu0
        %v526 = vadd.f32 0.0, %v525
        %v527 = vpop.f32.mrf.mxu0
        %v528 = vadd.f32 0.0, %v527
        %529 = vdwg.mxu0
        %v532 = vunpack.c.l.b16 %v296
        %v533 = vunpack.c.l.b16 %v297
        %v534 = vpack.c.b16 %v533, %v532
        %v536 = vsel %vm512, %v534, 0
        %538 = vmatpush.bf16.msra.mxu0 0
        %539 = vmatpush.bf16.msra.mxu0 0
        %540 = vmatpush.bf16.msra.mxu0 0
        %541 = vmatpush.bf16.msra.mxu0 0
        %542 = vmatpush.bf16.msra.mxu0 0
        %543 = vmatpush.bf16.msra.mxu0 0
        %544 = vmatpush.bf16.msra.mxu0 0
        %545 = vmatpush.bf16.msra.mxu0 %v505
        %546 = vmatmul.bf16.gmra.mxu0 %v536
        %v547 = vpop.f32.mrf.mxu0
        %v548 = vadd.f32 %v526, %v547
        %v549 = vpop.f32.mrf.mxu0
        %v550 = vadd.f32 %v528, %v549
        %551 = vdwg.mxu0
        %v552 = vadd.f32 %v473, %v548
        %v553 = vadd.f32 %v475, %v550
        %v554 = vld [vmem:[%s4] sm:$0x1]
        %v556 = vperm.slane %v554, 0
        %v558 = vadd.f32 %v552, %v556
        %v559 = vadd.f32 %v553, %v556
        %s560 = scalar_lea.vmem [#allocation8], 192
        %v561 = vld [vmem:[%s560] sm:$0xff]
        %v562 = vld [vmem:[%s560 + $0x8] sm:$0xf]
        %v563 = vld [vmem:[%s560 + $0xc] sm:$0xff]
        %v564 = vld [vmem:[%s560 + $0x14] sm:$0xf]
        %v565 = vld [vmem:[%s560 + $0x18] sm:$0xff]
        %v566 = vld [vmem:[%s560 + $0x20] sm:$0xf]
        %v567 = vld [vmem:[%s560 + $0x24] sm:$0xff]
        %v568 = vld [vmem:[%s560 + $0x2c] sm:$0xf]
        %v569 = vld [vmem:[%s560 + $0x30] sm:$0xff]
        %v570 = vld [vmem:[%s560 + $0x38] sm:$0xf]
        %v571 = vld [vmem:[%s560 + $0x3c] sm:$0xff]
        %v572 = vld [vmem:[%s560 + $0x44] sm:$0xf]
        %v573 = vld [vmem:[%s560 + $0x48] sm:$0xff]
        %v574 = vld [vmem:[%s560 + $0x50] sm:$0xf]
        %v575 = vld [vmem:[%s560 + $0x54] sm:$0xff]
        %v576 = vld [vmem:[%s560 + $0x5c] sm:$0xf]
        %v577 = vld [vmem:[%s560 + $0x60] sm:$0xff]
        %v578 = vld [vmem:[%s560 + $0x68] sm:$0xf]
        %v579 = vld [vmem:[%s560 + $0x6c] sm:$0xff]
        %v580 = vld [vmem:[%s560 + $0x74] sm:$0xf]
        %v581 = vld [vmem:[%s560 + $0x78] sm:$0xff]
        %v582 = vld [vmem:[%s560 + $0x80] sm:$0xf]
        %v583 = vld [vmem:[%s560 + $0x84] sm:$0xff]
        %v584 = vld [vmem:[%s560 + $0x8c] sm:$0xf]
        %v585 = vld [vmem:[%s560 + $0x90] sm:$0xff]
        %v586 = vld [vmem:[%s560 + $0x98] sm:$0xf]
        %v587 = vld [vmem:[%s560 + $0x9c] sm:$0xff]
        %v588 = vld [vmem:[%s560 + $0xa4] sm:$0xf]
        %v589 = vld [vmem:[%s560 + $0xa8] sm:$0xff]
        %v590 = vld [vmem:[%s560 + $0xb0] sm:$0xf]
        %v591 = vld [vmem:[%s560 + $0xb4] sm:$0xff]
        %v592 = vld [vmem:[%s560 + $0xbc] sm:$0xf]
        %v593 = vpack.c.bf16 %v559, %v558
        %v626 = vunpack.c.l.b16 %v561
        %v627 = vunpack.c.h.b16 %v561
        %v628 = vunpack.c.l.b16 %v562
        %v629 = vunpack.c.l.b16 %v563
        %v630 = vunpack.c.h.b16 %v563
        %v631 = vunpack.c.l.b16 %v564
        %v632 = vunpack.c.l.b16 %v565
        %v633 = vunpack.c.h.b16 %v565
        %v634 = vunpack.c.l.b16 %v566
        %v635 = vunpack.c.l.b16 %v567
        %v636 = vunpack.c.h.b16 %v567
        %v637 = vunpack.c.l.b16 %v568
        %v638 = vunpack.c.l.b16 %v569
        %v639 = vunpack.c.h.b16 %v569
        %v640 = vunpack.c.l.b16 %v570
        %v641 = vunpack.c.l.b16 %v571
        %v642 = vunpack.c.h.b16 %v571
        %v643 = vunpack.c.l.b16 %v572
        %v644 = vunpack.c.l.b16 %v573
        %v645 = vunpack.c.h.b16 %v573
        %v646 = vunpack.c.l.b16 %v574
        %v647 = vunpack.c.l.b16 %v575
        %v648 = vunpack.c.h.b16 %v575
        %v649 = vunpack.c.l.b16 %v576
        %v650 = vunpack.c.l.b16 %v577
        %v651 = vunpack.c.h.b16 %v577
        %v652 = vunpack.c.l.b16 %v578
        %v653 = vunpack.c.l.b16 %v579
        %v654 = vunpack.c.h.b16 %v579
        %v655 = vunpack.c.l.b16 %v580
        %v656 = vunpack.c.l.b16 %v581
        %v657 = vunpack.c.h.b16 %v581
        %v658 = vunpack.c.l.b16 %v582
        %v659 = vunpack.c.l.b16 %v583
        %v660 = vunpack.c.h.b16 %v583
        %v661 = vunpack.c.l.b16 %v584
        %v662 = vunpack.c.l.b16 %v585
        %v663 = vunpack.c.h.b16 %v585
        %v664 = vunpack.c.l.b16 %v586
        %v665 = vunpack.c.l.b16 %v587
        %v666 = vunpack.c.h.b16 %v587
        %v667 = vunpack.c.l.b16 %v588
        %v668 = vunpack.c.l.b16 %v589
        %v669 = vunpack.c.h.b16 %v589
        %v670 = vunpack.c.l.b16 %v590
        %v671 = vunpack.c.l.b16 %v591
        %v672 = vunpack.c.h.b16 %v591
        %v673 = vunpack.c.l.b16 %v592
        %v674 = vpack.c.b16 %v629, %v626
        %v675 = vpack.c.b16 %v630, %v627
        %v676 = vpack.c.b16 %v631, %v628
        %v677 = vpack.c.b16 %v635, %v632
        %v678 = vpack.c.b16 %v636, %v633
        %v679 = vpack.c.b16 %v637, %v634
        %v680 = vpack.c.b16 %v641, %v638
        %v681 = vpack.c.b16 %v642, %v639
        %v682 = vpack.c.b16 %v643, %v640
        %v683 = vpack.c.b16 %v647, %v644
        %v684 = vpack.c.b16 %v648, %v645
        %v685 = vpack.c.b16 %v649, %v646
        %v686 = vpack.c.b16 %v653, %v650
        %v687 = vpack.c.b16 %v654, %v651
        %v688 = vpack.c.b16 %v655, %v652
        %v689 = vpack.c.b16 %v659, %v656
        %v690 = vpack.c.b16 %v660, %v657
        %v691 = vpack.c.b16 %v661, %v658
        %v692 = vpack.c.b16 %v665, %v662
        %v693 = vpack.c.b16 %v666, %v663
        %v694 = vpack.c.b16 %v667, %v664
        %v695 = vpack.c.b16 %v671, %v668
        %v696 = vpack.c.b16 %v672, %v669
        %v697 = vpack.c.b16 %v673, %v670
        %722 = vmatpush.bf16.msra.mxu0 %v695
        %723 = vmatpush.bf16.msra.mxu0 %v692
        %724 = vmatpush.bf16.msra.mxu0 %v689
        %725 = vmatpush.bf16.msra.mxu0 %v686
        %726 = vmatpush.bf16.msra.mxu0 %v683
        %727 = vmatpush.bf16.msra.mxu0 %v680
        %728 = vmatpush.bf16.msra.mxu0 %v677
        %729 = vmatpush.bf16.msra.mxu0 %v674
        %730 = vmatmul.bf16.gmra.mxu0 %v593
        %v731 = vpop.f32.mrf.mxu0
        %v732 = vadd.f32 0.0, %v731
        %v733 = vpop.f32.mrf.mxu0
        %v734 = vadd.f32 0.0, %v733
        %735 = vdwg.mxu0
        %736 = vmatpush.bf16.msra.mxu0 %v696
        %737 = vmatpush.bf16.msra.mxu0 %v693
        %738 = vmatpush.bf16.msra.mxu0 %v690
        %739 = vmatpush.bf16.msra.mxu0 %v687
        %740 = vmatpush.bf16.msra.mxu0 %v684
        %741 = vmatpush.bf16.msra.mxu0 %v681
        %742 = vmatpush.bf16.msra.mxu0 %v678
        %743 = vmatpush.bf16.msra.mxu0 %v675
        %744 = vmatmul.bf16.gmra.mxu0 %v593
        %v745 = vpop.f32.mrf.mxu0
        %v746 = vadd.f32 0.0, %v745
        %v747 = vpop.f32.mrf.mxu0
        %v748 = vadd.f32 0.0, %v747
        %749 = vdwg.mxu0
        %750 = vmatpush.bf16.msra.mxu0 %v697
        %751 = vmatpush.bf16.msra.mxu0 %v694
        %752 = vmatpush.bf16.msra.mxu0 %v691
        %753 = vmatpush.bf16.msra.mxu0 %v688
        %754 = vmatpush.bf16.msra.mxu0 %v685
        %755 = vmatpush.bf16.msra.mxu0 %v682
        %756 = vmatpush.bf16.msra.mxu0 %v679
        %757 = vmatpush.bf16.msra.mxu0 %v676
        %758 = vmatmul.bf16.gmra.mxu0 %v593
        %v759 = vpop.f32.mrf.mxu0
        %v760 = vadd.f32 0.0, %v759
        %v761 = vpop.f32.mrf.mxu0
        %v762 = vadd.f32 0.0, %v761
        %763 = vdwg.mxu0
        %v764 = vpack.c.bf16 %v748, %v746
        %v765 = vpack.c.bf16 %v762, %v760
        %766 = vmatpush.bf16.msra.mxu0 0
        %767 = vmatpush.bf16.msra.mxu0 0
        %768 = vmatpush.bf16.msra.mxu0 0
        %769 = vmatpush.bf16.msra.mxu0 0
        %770 = vmatpush.bf16.msra.mxu0 0
        %771 = vmatpush.bf16.msra.mxu0 0
        %772 = vmatpush.bf16.msra.mxu0 0
        %773 = vmatpush.bf16.msra.mxu0 %v765
        %774 = vmatmul.bf16.gmra.mxu0 %v514
        %v775 = vpop.f32.mrf.mxu0
        %v776 = vadd.f32 0.0, %v775
        %v777 = vpop.f32.mrf.mxu0
        %v778 = vadd.f32 0.0, %v777
        %779 = vdwg.mxu0
        %780 = vmatpush.bf16.msra.mxu0 0
        %781 = vmatpush.bf16.msra.mxu0 0
        %782 = vmatpush.bf16.msra.mxu0 0
        %783 = vmatpush.bf16.msra.mxu0 0
        %784 = vmatpush.bf16.msra.mxu0 0
        %785 = vmatpush.bf16.msra.mxu0 0
        %786 = vmatpush.bf16.msra.mxu0 0
        %787 = vmatpush.bf16.msra.mxu0 %v764
        %788 = vmatmul.bf16.gmra.mxu0 %v536
        %v789 = vpop.f32.mrf.mxu0
        %v790 = vadd.f32 %v776, %v789
        %v791 = vpop.f32.mrf.mxu0
        %v792 = vadd.f32 %v778, %v791
        %793 = vdwg.mxu0
        %v794 = vadd.f32 %v732, %v790
        %v795 = vadd.f32 %v734, %v792
        %s796 = scalar_lea.vmem %s4, 1
        %v797 = vld [vmem:[%s796] sm:$0x1]
        %v799 = vperm.slane %v797, 0
        %v801 = vadd.f32 %v794, %v799
        %v802 = vadd.f32 %v795, %v799
        %s803 = scalar_lea.vmem [#allocation8], 384
        %v804 = vld [vmem:[%s803] sm:$0xff]
        %v805 = vld [vmem:[%s803 + $0x8] sm:$0xf]
        %v806 = vld [vmem:[%s803 + $0xc] sm:$0xff]
        %v807 = vld [vmem:[%s803 + $0x14] sm:$0xf]
        %v808 = vld [vmem:[%s803 + $0x18] sm:$0xff]
        %v809 = vld [vmem:[%s803 + $0x20] sm:$0xf]
        %v810 = vld [vmem:[%s803 + $0x24] sm:$0xff]
        %v811 = vld [vmem:[%s803 + $0x2c] sm:$0xf]
        %v812 = vld [vmem:[%s803 + $0x30] sm:$0xff]
        %v813 = vld [vmem:[%s803 + $0x38] sm:$0xf]
        %v814 = vld [vmem:[%s803 + $0x3c] sm:$0xff]
        %v815 = vld [vmem:[%s803 + $0x44] sm:$0xf]
        %v816 = vld [vmem:[%s803 + $0x48] sm:$0xff]
        %v817 = vld [vmem:[%s803 + $0x50] sm:$0xf]
        %v818 = vld [vmem:[%s803 + $0x54] sm:$0xff]
        %v819 = vld [vmem:[%s803 + $0x5c] sm:$0xf]
        %v820 = vld [vmem:[%s803 + $0x60] sm:$0xff]
        %v821 = vld [vmem:[%s803 + $0x68] sm:$0xf]
        %v822 = vld [vmem:[%s803 + $0x6c] sm:$0xff]
        %v823 = vld [vmem:[%s803 + $0x74] sm:$0xf]
        %v824 = vld [vmem:[%s803 + $0x78] sm:$0xff]
        %v825 = vld [vmem:[%s803 + $0x80] sm:$0xf]
        %v826 = vld [vmem:[%s803 + $0x84] sm:$0xff]
        %v827 = vld [vmem:[%s803 + $0x8c] sm:$0xf]
        %v828 = vld [vmem:[%s803 + $0x90] sm:$0xff]
        %v829 = vld [vmem:[%s803 + $0x98] sm:$0xf]
        %v830 = vld [vmem:[%s803 + $0x9c] sm:$0xff]
        %v831 = vld [vmem:[%s803 + $0xa4] sm:$0xf]
        %v832 = vld [vmem:[%s803 + $0xa8] sm:$0xff]
        %v833 = vld [vmem:[%s803 + $0xb0] sm:$0xf]
        %v834 = vld [vmem:[%s803 + $0xb4] sm:$0xff]
        %v835 = vld [vmem:[%s803 + $0xbc] sm:$0xf]
        %v836 = vpack.c.bf16 %v802, %v801
        %v869 = vunpack.c.l.b16 %v804
        %v870 = vunpack.c.h.b16 %v804
        %v871 = vunpack.c.l.b16 %v805
        %v872 = vunpack.c.l.b16 %v806
        %v873 = vunpack.c.h.b16 %v806
        %v874 = vunpack.c.l.b16 %v807
        %v875 = vunpack.c.l.b16 %v808
        %v876 = vunpack.c.h.b16 %v808
        %v877 = vunpack.c.l.b16 %v809
        %v878 = vunpack.c.l.b16 %v810
        %v879 = vunpack.c.h.b16 %v810
        %v880 = vunpack.c.l.b16 %v811
        %v881 = vunpack.c.l.b16 %v812
        %v882 = vunpack.c.h.b16 %v812
        %v883 = vunpack.c.l.b16 %v813
        %v884 = vunpack.c.l.b16 %v814
        %v885 = vunpack.c.h.b16 %v814
        %v886 = vunpack.c.l.b16 %v815
        %v887 = vunpack.c.l.b16 %v816
        %v888 = vunpack.c.h.b16 %v816
        %v889 = vunpack.c.l.b16 %v817
        %v890 = vunpack.c.l.b16 %v818
        %v891 = vunpack.c.h.b16 %v818
        %v892 = vunpack.c.l.b16 %v819
        %v893 = vunpack.c.l.b16 %v820
        %v894 = vunpack.c.h.b16 %v820
        %v895 = vunpack.c.l.b16 %v821
        %v896 = vunpack.c.l.b16 %v822
        %v897 = vunpack.c.h.b16 %v822
        %v898 = vunpack.c.l.b16 %v823
        %v899 = vunpack.c.l.b16 %v824
        %v900 = vunpack.c.h.b16 %v824
        %v901 = vunpack.c.l.b16 %v825
        %v902 = vunpack.c.l.b16 %v826
        %v903 = vunpack.c.h.b16 %v826
        %v904 = vunpack.c.l.b16 %v827
        %v905 = vunpack.c.l.b16 %v828
        %v906 = vunpack.c.h.b16 %v828
        %v907 = vunpack.c.l.b16 %v829
        %v908 = vunpack.c.l.b16 %v830
        %v909 = vunpack.c.h.b16 %v830
        %v910 = vunpack.c.l.b16 %v831
        %v911 = vunpack.c.l.b16 %v832
        %v912 = vunpack.c.h.b16 %v832
        %v913 = vunpack.c.l.b16 %v833
        %v914 = vunpack.c.l.b16 %v834
        %v915 = vunpack.c.h.b16 %v834
        %v916 = vunpack.c.l.b16 %v835
        %v917 = vpack.c.b16 %v872, %v869
        %v918 = vpack.c.b16 %v873, %v870
        %v919 = vpack.c.b16 %v874, %v871
        %v920 = vpack.c.b16 %v878, %v875
        %v921 = vpack.c.b16 %v879, %v876
        %v922 = vpack.c.b16 %v880, %v877
        %v923 = vpack.c.b16 %v884, %v881
        %v924 = vpack.c.b16 %v885, %v882
        %v925 = vpack.c.b16 %v886, %v883
        %v926 = vpack.c.b16 %v890, %v887
        %v927 = vpack.c.b16 %v891, %v888
        %v928 = vpack.c.b16 %v892, %v889
        %v929 = vpack.c.b16 %v896, %v893
        %v930 = vpack.c.b16 %v897, %v894
        %v931 = vpack.c.b16 %v898, %v895
        %v932 = vpack.c.b16 %v902, %v899
        %v933 = vpack.c.b16 %v903, %v900
        %v934 = vpack.c.b16 %v904, %v901
        %v935 = vpack.c.b16 %v908, %v905
        %v936 = vpack.c.b16 %v909, %v906
        %v937 = vpack.c.b16 %v910, %v907
        %v938 = vpack.c.b16 %v914, %v911
        %v939 = vpack.c.b16 %v915, %v912
        %v940 = vpack.c.b16 %v916, %v913
        %965 = vmatpush.bf16.msra.mxu0 %v938
        %966 = vmatpush.bf16.msra.mxu0 %v935
        %967 = vmatpush.bf16.msra.mxu0 %v932
        %968 = vmatpush.bf16.msra.mxu0 %v929
        %969 = vmatpush.bf16.msra.mxu0 %v926
        %970 = vmatpush.bf16.msra.mxu0 %v923
        %971 = vmatpush.bf16.msra.mxu0 %v920
        %972 = vmatpush.bf16.msra.mxu0 %v917
        %973 = vmatmul.bf16.gmra.mxu0 %v836
        %v974 = vpop.f32.mrf.mxu0
        %v975 = vadd.f32 0.0, %v974
        %v976 = vpop.f32.mrf.mxu0
        %v977 = vadd.f32 0.0, %v976
        %978 = vdwg.mxu0
        %979 = vmatpush.bf16.msra.mxu0 %v939
        %980 = vmatpush.bf16.msra.mxu0 %v936
        %981 = vmatpush.bf16.msra.mxu0 %v933
        %982 = vmatpush.bf16.msra.mxu0 %v930
        %983 = vmatpush.bf16.msra.mxu0 %v927
        %984 = vmatpush.bf16.msra.mxu0 %v924
        %985 = vmatpush.bf16.msra.mxu0 %v921
        %986 = vmatpush.bf16.msra.mxu0 %v918
        %987 = vmatmul.bf16.gmra.mxu0 %v836
        %v988 = vpop.f32.mrf.mxu0
        %v989 = vadd.f32 0.0, %v988
        %v990 = vpop.f32.mrf.mxu0
        %v991 = vadd.f32 0.0, %v990
        %992 = vdwg.mxu0
        %993 = vmatpush.bf16.msra.mxu0 %v940
        %994 = vmatpush.bf16.msra.mxu0 %v937
        %995 = vmatpush.bf16.msra.mxu0 %v934
        %996 = vmatpush.bf16.msra.mxu0 %v931
        %997 = vmatpush.bf16.msra.mxu0 %v928
        %998 = vmatpush.bf16.msra.mxu0 %v925
        %999 = vmatpush.bf16.msra.mxu0 %v922
        %1000 = vmatpush.bf16.msra.mxu0 %v919
        %1001 = vmatmul.bf16.gmra.mxu0 %v836
        %v1002 = vpop.f32.mrf.mxu0
        %v1003 = vadd.f32 0.0, %v1002
        %v1004 = vpop.f32.mrf.mxu0
        %v1005 = vadd.f32 0.0, %v1004
        %1006 = vdwg.mxu0
        %v1007 = vpack.c.bf16 %v991, %v989
        %v1008 = vpack.c.bf16 %v1005, %v1003
        %1009 = vmatpush.bf16.msra.mxu0 0
        %1010 = vmatpush.bf16.msra.mxu0 0
        %1011 = vmatpush.bf16.msra.mxu0 0
        %1012 = vmatpush.bf16.msra.mxu0 0
        %1013 = vmatpush.bf16.msra.mxu0 0
        %1014 = vmatpush.bf16.msra.mxu0 0
        %1015 = vmatpush.bf16.msra.mxu0 0
        %1016 = vmatpush.bf16.msra.mxu0 %v1008
        %1017 = vmatmul.bf16.gmra.mxu0 %v514
        %v1018 = vpop.f32.mrf.mxu0
        %v1019 = vadd.f32 0.0, %v1018
        %v1020 = vpop.f32.mrf.mxu0
        %v1021 = vadd.f32 0.0, %v1020
        %1022 = vdwg.mxu0
        %1023 = vmatpush.bf16.msra.mxu0 0
        %1024 = vmatpush.bf16.msra.mxu0 0
        %1025 = vmatpush.bf16.msra.mxu0 0
        %1026 = vmatpush.bf16.msra.mxu0 0
        %1027 = vmatpush.bf16.msra.mxu0 0
        %1028 = vmatpush.bf16.msra.mxu0 0
        %1029 = vmatpush.bf16.msra.mxu0 0
        %1030 = vmatpush.bf16.msra.mxu0 %v1007
        %1031 = vmatmul.bf16.gmra.mxu0 %v536
        %v1032 = vpop.f32.mrf.mxu0
        %v1033 = vadd.f32 %v1019, %v1032
        %v1034 = vpop.f32.mrf.mxu0
        %v1035 = vadd.f32 %v1021, %v1034
        %1036 = vdwg.mxu0
        %v1037 = vadd.f32 %v975, %v1033
        %v1038 = vadd.f32 %v977, %v1035
        %s1039 = scalar_lea.vmem %s4, 2
        %v1040 = vld [vmem:[%s1039] sm:$0x1]
        %v1042 = vperm.slane %v1040, 0
        %v1044 = vadd.f32 %v1037, %v1042
        %v1045 = vadd.f32 %v1038, %v1042
        %1046 = vst [vmem:[%s294] sm:$0xff] %v1044
        %1047 = vst [vmem:[%s294 + $0x8] sm:$0xff] %v1045
        %s1048 = sand.u32 %s142, 1
        %s1049 = scalar_lea.sflag [#allocation4], %s1048
        %s1050 = sand.u32 %s142, 1
        %s1051 = smul.addr %s1050, 16
        %s1052 = scalar_lea.vmem [#allocation10], %s1051
        // Predicated region
        $region57: #{tpu_custom_call.1} parent=39 // pred_check
          %p1053 = pneg %p152
        $region58: #{tpu_custom_call.1} parent=39 // pred_check_branch
          %1055 = sbr.rel (%p1053) target = $region60
        $region59: #{tpu_custom_call.1} parent=39 // pred_region
          %1057 = vsyncadd %s1049, 0
          %s1058 = smul.addr %s24, 2
          %s1059 = smul.addr %s1058, 8
          %s1060 = scalar_lea.hbm %s5, %s1059
          %s1061 = sshll.u32 %s1052, 4
          %s1062 = int_to_ptr.vmem [resolvable:$true] %s1061
          %s1063 = sshll.u32 %s1060, 4
          %s1064 = int_to_ptr.hbm [resolvable:$true] %s1063
          %1069 = dma.vmem_to_hbm [thread:$0]  %s1062, 256, %s1064, %s1049, 128, 128, 8
        $region60: #{tpu_custom_call.1} parent=39 // pred_fallthru
          _
      $region40: #{tpu_custom_call.1} parent=5 // pred_fallthru
        _
      %p1070 = scmp.le.s32.totalorder 2, %s19
      // Predicated region
      $region61: #{tpu_custom_call.1} parent=5 // pred_check
        %p1071 = pneg %p1070
      $region62: #{tpu_custom_call.1} parent=5 // pred_check_branch
        %1073 = sbr.rel (%p1071) target = $region64
      $region63: #{tpu_custom_call.1} parent=5 // pred_region
        %s1074 = ssub.s32 %s19, 2
        // Predicated region
        $region65: #{tpu_custom_call.1} parent=63 // pred_check
          %p1075 = pneg %p158
        $region66: #{tpu_custom_call.1} parent=63 // pred_check_branch
          %1077 = sbr.rel (%p1075) target = $region68
        $region67: #{tpu_custom_call.1} parent=63 // pred_region
          %s1078 = sand.u32 %s143, 1
          %s1079 = scalar_lea.sflag [#allocation4], %s1078
          %s1080 = sand.u32 %s143, 1
          %s1081 = smul.addr %s1080, 16
          %s1082 = scalar_lea.vmem [#allocation10], %s1081
          %1084 = dma.done %s1079, 256
        $region68: #{tpu_custom_call.1} parent=63 // pred_fallthru
          _
      $region64: #{tpu_custom_call.1} parent=5 // pred_fallthru
        _
    $region6: #{tpu_custom_call.1} parent=1 // loop_footer
      %s23 = sadd.s32 1, %s19
    $region7: #{tpu_custom_call.1} parent=1 // loop_footer_branch
      %18 = sbr.rel target = $region3
    $region8: #{tpu_custom_call.1} parent=1 // loop_exit
      _
    %1085 = vsyncpa [#allocation3], 1
    %s1086 = scalar_lea.sflag [#allocation3], 1
    %1087 = vsyncpa %s1086, 1
    %1088 = vsyncpa [#allocation6], 1
    %1089 = vsyncpa [#allocation9], 1
    %1090 = vsyncpa [#allocation4], 1
    %s1091 = scalar_lea.sflag [#allocation4], 1
    %1092 = vsyncpa %s1091, 1

</llo_original>
